<compile_context>
chip_gen: v6e
topology: v6e:2x2x1
jax: 0.10.0
libtpu: 0.0.40
codegen_flags: <defaults>
</compile_context>

<pallas_src>
import functools

import jax
import jax.numpy as jnp
import numpy as np
from jax import lax
from jax.experimental import pallas as pl
from jax.experimental.pallas import tpu as pltpu

BN_EPS = 1e-3


# ----------------------------- pass 1 kernel --------------------------------
def _matmul_stats_kernel(p_ref, w_ref, y_ref, stats_ref, acc_ref):
    # p_ref: [tm, tk] im2col patches tile, w_ref: [tk, tn] weight tile
    # y_ref: [tm, tn] conv output tile, stats_ref: [1, 2, tn] (sum, sumsq)
    # acc_ref: [tm, tn] f32 accumulator, resident across the K grid axis.
    k = pl.program_id(2)

    @pl.when(k == 0)
    def _():
        acc_ref[...] = jnp.zeros_like(acc_ref)

    acc_ref[...] += jnp.dot(p_ref[...], w_ref[...],
                            preferred_element_type=jnp.float32)

    @pl.when(k == pl.num_programs(2) - 1)
    def _():
        acc = acc_ref[...]
        y_ref[...] = acc.astype(y_ref.dtype)
        s1 = jnp.sum(acc, axis=0, keepdims=True)           # (1, tn)
        s2 = jnp.sum(acc * acc, axis=0, keepdims=True)     # (1, tn)
        stats_ref[...] = jnp.concatenate([s1, s2], axis=0)[None]


# ----------------------------- pass 2 kernel --------------------------------
def _bn_relu_kernel(y_ref, scale_ref, shift_ref, o_ref, *, c_out):
    # y_ref: [tm, Cp] conv output tile; scale/shift: [1, c_out]; o_ref: [tm, c_out]
    y = y_ref[:, :c_out].astype(jnp.float32)
    out = y * scale_ref[...] + shift_ref[...]               # single FMA
    o_ref[...] = jnp.maximum(out, 0.0).astype(o_ref.dtype)


# ------------------------------- wrapper -------------------------------------
def _im2col_nchw(x, kh, kw, stride, pad):
    """x: [N, C, H, W] -> patches [N*Ho*Wo, C*kh*kw] (feature order C, kh, kw)."""
    n, c, h, w = x.shape
    xp = jnp.pad(x, ((0, 0), (0, 0), (pad, pad), (pad, pad)))
    ho = (h + 2 * pad - kh) // stride + 1
    wo = (w + 2 * pad - kw) // stride + 1
    cols = []
    for i in range(kh):
        for j in range(kw):
            cols.append(xp[:, :, i:i + stride * ho:stride, j:j + stride * wo:stride])
    cols = jnp.stack(cols, axis=0).reshape(kh, kw, n, c, ho, wo)
    cols = cols.transpose(2, 4, 5, 3, 0, 1).reshape(n * ho * wo, c * kh * kw)
    return cols, ho, wo


def _round_up(x, m):
    return (x + m - 1) // m * m


@functools.partial(
    jax.jit,
    static_argnames=("stride", "padding", "block_m", "block_n", "block_k", "mxu_dtype"))
def basic_conv2d(x, weight, gamma, beta, *, stride=1, padding=1,
                 block_m=512, block_n=256, block_k=512, mxu_dtype=None):
    """Forward of BasicConv2d.

    x:      [N, C_in, H, W]          (NCHW, matches PyTorch)
    weight: [C_out, C_in, KH, KW]    (PyTorch Conv2d weight, bias=False)
    gamma, beta: [C_out]             (BatchNorm2d affine params)
    mxu_dtype: optionally jnp.bfloat16 to feed the MXU bf16 on v6e/v7x
               (accumulation and BN stats stay f32; loosens tolerance).
    returns [N, C_out, H_out, W_out]
    """
    n, c_in, h, w = x.shape
    c_out, _, kh, kw = weight.shape

    # TODO(synk): the materialized im2col below writes+re-reads kh*kw x the
    # input bytes in HBM; on v5e a tap-reduction formulation (manual DMA over
    # an NHWC-padded input) would cut that traffic ~(kh*kw)x.
    patches, ho, wo = _im2col_nchw(x, kh, kw, stride, padding)      # [M, K]
    w2d = weight.reshape(c_out, c_in * kh * kw).T                   # [K, C_out]

    m, kdim = patches.shape

    # Tile sizes (multiples of (8, 128), shrunk for small problems; block_m is
    # capped at 512 so double-buffered tiles stay well inside v7x's 64 MiB VMEM).
    tm = min(block_m, _round_up(m, 8))
    tk = min(block_k, _round_up(kdim, 128))
    tn = min(block_n, _round_up(c_out, 128))
    m_pad = _round_up(m, tm)
    kp = _round_up(kdim, tk)
    cp = _round_up(c_out, tn)
    gm, gc, gk = m_pad // tm, cp // tn, kp // tk

    patches_p = jnp.pad(patches, ((0, m_pad - m), (0, kp - kdim)))
    w_p = jnp.pad(w2d, ((0, kp - kdim), (0, cp - c_out)))
    if mxu_dtype is not None:
        patches_p = patches_p.astype(mxu_dtype)
        w_p = w_p.astype(mxu_dtype)

    bytes_in = patches_p.dtype.itemsize

    # ---- pass 1: tiled matmul + per-tile partial BN statistics -------------
    y, stats = pl.pallas_call(
        _matmul_stats_kernel,
        out_shape=(jax.ShapeDtypeStruct((m_pad, cp), x.dtype),
                   jax.ShapeDtypeStruct((gm, 2, cp), jnp.float32)),
        grid=(gm, gc, gk),
        in_specs=[
            pl.BlockSpec((tm, tk), lambda i, j, k: (i, k)),
            pl.BlockSpec((tk, tn), lambda i, j, k: (k, j)),
        ],
        out_specs=[
            pl.BlockSpec((tm, tn), lambda i, j, k: (i, j)),
            pl.BlockSpec((1, 2, tn), lambda i, j, k: (i, 0, j)),
        ],
        scratch_shapes=[pltpu.VMEM((tm, tn), jnp.float32)],
        compiler_params=pltpu.CompilerParams(
            dimension_semantics=("parallel", "parallel", "arbitrary"),
            vmem_limit_bytes=64 * 1024 * 1024),
        cost_estimate=pl.CostEstimate(
            flops=2 * m_pad * kp * cp,
            transcendentals=0,
            bytes_accessed=(m_pad * kp + kp * cp) * bytes_in
                           + m_pad * cp * x.dtype.itemsize),
    )(patches_p, w_p)

    # ---- reduce stats across M tiles, fold BN into per-channel scale/shift --
    sums = jnp.sum(stats, axis=0)                        # (2, cp), tiny
    mean = sums[0, :c_out] / m
    # biased variance (training-mode BatchNorm normalization)
    var = jnp.maximum(sums[1, :c_out] / m - mean * mean, 0.0)
    inv_std = lax.rsqrt(var + BN_EPS)
    g32 = gamma.astype(jnp.float32)
    scale = (g32 * inv_std).reshape(1, c_out)
    shift = (beta.astype(jnp.float32) - mean * g32 * inv_std).reshape(1, c_out)

    # ---- pass 2: mem-bound normalize + ReLU, exact C_out width --------------
    out2d = pl.pallas_call(
        functools.partial(_bn_relu_kernel, c_out=c_out),
        out_shape=jax.ShapeDtypeStruct((m_pad, c_out), x.dtype),
        grid=(gm,),
        in_specs=[
            pl.BlockSpec((tm, cp), lambda i: (i, 0)),
            pl.BlockSpec((1, c_out), lambda i: (0, 0)),   # not re-DMA'd per tile
            pl.BlockSpec((1, c_out), lambda i: (0, 0)),
        ],
        out_specs=pl.BlockSpec((tm, c_out), lambda i: (i, 0)),
        compiler_params=pltpu.CompilerParams(
            dimension_semantics=("parallel",),
            vmem_limit_bytes=64 * 1024 * 1024),
        cost_estimate=pl.CostEstimate(
            flops=2 * m_pad * c_out,
            transcendentals=0,
            bytes_accessed=(m_pad * cp + m_pad * c_out) * x.dtype.itemsize),
    )(y, scale, shift)

    # TODO(synk): keep NHWC for downstream consumers to skip this final
    # transpose / extra HBM round trip (NCHW kept here to match PyTorch).
    out2d = out2d[:m]
    return out2d.reshape(n, ho, wo, c_out).transpose(0, 3, 1, 2)    # NCHW


# ------------------------------ reference ------------------------------------
def _reference(x, weight, gamma, beta, stride, padding):
    y = lax.conv_general_dilated(
        x, weight, window_strides=(stride, stride),
        padding=[(padding, padding), (padding, padding)],
        dimension_numbers=("NCHW", "OIHW", "NCHW"))
    mean = jnp.mean(y, axis=(0, 2, 3), keepdims=True)
    var = jnp.mean((y - mean) ** 2, axis=(0, 2, 3), keepdims=True)
    yn = (y - mean) / jnp.sqrt(var + BN_EPS)
    yn = gamma.reshape(1, -1, 1, 1) * yn + beta.reshape(1, -1, 1, 1)
    return jnp.maximum(yn, 0.0)


if __name__ == "__main__":
    key = jax.random.PRNGKey(0)
    k_x, k_w = jax.random.split(key)

    N, C_IN, H, W = 2, 4, 16, 16
    C_OUT, KH, KW = 8, 3, 3
    STRIDE, PADDING = 1, 1

    x = jax.random.normal(k_x, (N, C_IN, H, W), dtype=jnp.float32)
    weight = 0.1 * jax.random.normal(k_w, (C_OUT, C_IN, KH, KW), dtype=jnp.float32)
    gamma = jnp.ones((C_OUT,), dtype=jnp.float32)    # PyTorch BN default init
    beta = jnp.zeros((C_OUT,), dtype=jnp.float32)

    # block_m=128 -> 4 M-tiles, exercising the tiled grid + cross-tile BN stats.
    out = basic_conv2d(x, weight, gamma, beta,
                       stride=STRIDE, padding=PADDING, block_m=128)
    out = jax.block_until_ready(out)

    ref = _reference(x, weight, gamma, beta, STRIDE, PADDING)
    np.testing.assert_allclose(np.asarray(out), np.asarray(ref),
                               atol=1e-4, rtol=1e-4)

    print("KERNEL_OK")
</pallas_src>

<mosaic_0001>
module attributes {stable_mosaic.version = 11 : i64} {
  func.func @_matmul_stats_kernel(%arg0: i32, %arg1: i32, %arg2: i32, %arg3: memref<128x128xf32, #tpu.memory_space<vmem>>, %arg4: memref<128x128xf32, #tpu.memory_space<vmem>>, %arg5: memref<128x128xf32, #tpu.memory_space<vmem>>, %arg6: memref<1x2x128xf32, #tpu.memory_space<vmem>>, %arg7: memref<128x128xf32, #tpu.memory_space<vmem>>) attributes {dimension_semantics = [#tpu.dimension_semantics<parallel>, #tpu.dimension_semantics<parallel>, #tpu.dimension_semantics<arbitrary>], iteration_bounds = array<i64: 4, 1, 1>, scalar_prefetch = 0 : i64, scratch_operands = 1 : i64, tpu.core_type = #tpu.core_type<tc>, window_params = [{transform_indices = @transform_0, window_bounds = array<i64: 128, 128>}, {transform_indices = @transform_1, window_bounds = array<i64: 128, 128>}, {transform_indices = @transform_2, window_bounds = array<i64: 128, 128>}, {transform_indices = @transform_3, window_bounds = array<i64: 1, 2, 128>}]} {
    %c0_i32 = arith.constant 0 : i32
    %0 = arith.cmpi eq, %arg2, %c0_i32 : i32
    %1 = arith.extui %0 : i1 to i32
    %c0_i32_0 = arith.constant 0 : i32
    %2 = arith.cmpi ne, %1, %c0_i32_0 : i32
    scf.if %2 {
      %cst_10 = arith.constant 0.000000e+00 : f32
      %12 = vector.broadcast %cst_10 : f32 to vector<128x128xf32>
      %c0_11 = arith.constant 0 : index
      %c0_12 = arith.constant 0 : index
      %13 = vector.load %arg7[%c0_11, %c0_12] : memref<128x128xf32, #tpu.memory_space<vmem>>, vector<128x128xf32>
      tpu.vector_store %arg7[%c0_11, %c0_12], %12 {strides = array<i32>} : memref<128x128xf32, #tpu.memory_space<vmem>>, vector<128x128xf32>,
    } else {
    }
    %c0 = arith.constant 0 : index
    %c0_1 = arith.constant 0 : index
    %3 = vector.load %arg7[%c0, %c0_1] : memref<128x128xf32, #tpu.memory_space<vmem>>, vector<128x128xf32>
    %c0_2 = arith.constant 0 : index
    %c0_3 = arith.constant 0 : index
    %4 = vector.load %arg3[%c0_2, %c0_3] : memref<128x128xf32, #tpu.memory_space<vmem>>, vector<128x128xf32>
    %c0_4 = arith.constant 0 : index
    %c0_5 = arith.constant 0 : index
    %5 = vector.load %arg4[%c0_4, %c0_5] : memref<128x128xf32, #tpu.memory_space<vmem>>, vector<128x128xf32>
    %cst = arith.constant dense<0.000000e+00> : vector<128x128xf32>
    %6 = tpu.matmul %4, %5, %cst {dimension_numbers = #tpu.dot_dimension_numbers<[1], [0], [0], [1], [0, 0, 1, 1], [], []>} : vector<128x128xf32>, vector<128x128xf32>, vector<128x128xf32> -> vector<128x128xf32>
    %7 = arith.addf %3, %6 : vector<128x128xf32>
    %c0_6 = arith.constant 0 : index
    %c0_7 = arith.constant 0 : index
    %8 = vector.load %arg7[%c0_6, %c0_7] : memref<128x128xf32, #tpu.memory_space<vmem>>, vector<128x128xf32>
    tpu.vector_store %arg7[%c0_6, %c0_7], %7 {strides = array<i32>} : memref<128x128xf32, #tpu.memory_space<vmem>>, vector<128x128xf32>,
    %c0_i32_8 = arith.constant 0 : i32
    %9 = arith.cmpi eq, %arg2, %c0_i32_8 : i32
    %10 = arith.extui %9 : i1 to i32
    %c0_i32_9 = arith.constant 0 : i32
    %11 = arith.cmpi ne, %10, %c0_i32_9 : i32
    scf.if %11 {
      %c0_10 = arith.constant 0 : index
      %c0_11 = arith.constant 0 : index
      %12 = vector.load %arg7[%c0_10, %c0_11] : memref<128x128xf32, #tpu.memory_space<vmem>>, vector<128x128xf32>
      %c0_12 = arith.constant 0 : index
      %c0_13 = arith.constant 0 : index
      %13 = vector.load %arg5[%c0_12, %c0_13] : memref<128x128xf32, #tpu.memory_space<vmem>>, vector<128x128xf32>
      tpu.vector_store %arg5[%c0_12, %c0_13], %12 {strides = array<i32>} : memref<128x128xf32, #tpu.memory_space<vmem>>, vector<128x128xf32>,
      %cst_14 = arith.constant dense<0.000000e+00> : vector<128xf32>
      %14 = vector.multi_reduction <add>, %12, %cst_14 [0] : vector<128x128xf32> to vector<128xf32>
      %15 = vector.shape_cast %14 : vector<128xf32> to vector<1x128xf32>
      %16 = arith.mulf %12, %12 : vector<128x128xf32>
      %cst_15 = arith.constant dense<0.000000e+00> : vector<128xf32>
      %17 = vector.multi_reduction <add>, %16, %cst_15 [0] : vector<128x128xf32> to vector<128xf32>
      %18 = vector.shape_cast %17 : vector<128xf32> to vector<1x128xf32>
      %19 = tpu.concatenate %15, %18 in 0 : vector<1x128xf32>, vector<1x128xf32> -> vector<2x128xf32>
      %20 = vector.shape_cast %19 : vector<2x128xf32> to vector<1x2x128xf32>
      %c0_16 = arith.constant 0 : index
      %c0_17 = arith.constant 0 : index
      %c0_18 = arith.constant 0 : index
      %21 = vector.load %arg6[%c0_16, %c0_17, %c0_18] : memref<1x2x128xf32, #tpu.memory_space<vmem>>, vector<1x2x128xf32>
      tpu.vector_store %arg6[%c0_16, %c0_17, %c0_18], %20 {strides = array<i32>} : memref<1x2x128xf32, #tpu.memory_space<vmem>>, vector<1x2x128xf32>,
    } else {
    }
    return
  }
  func.func @transform_0(%arg0: i32, %arg1: i32, %arg2: i32) -> (i32, i32) {
    %c0_i32 = arith.constant 0 : i32
    return %arg0, %arg2 : i32, i32
  }
  func.func @transform_1(%arg0: i32, %arg1: i32, %arg2: i32) -> (i32, i32) {
    %c0_i32 = arith.constant 0 : i32
    return %arg2, %arg1 : i32, i32
  }
  func.func @transform_2(%arg0: i32, %arg1: i32, %arg2: i32) -> (i32, i32) {
    %c0_i32 = arith.constant 0 : i32
    return %arg0, %arg1 : i32, i32
  }
  func.func @transform_3(%arg0: i32, %arg1: i32, %arg2: i32) -> (i32, i32, i32) {
    %c0_i32 = arith.constant 0 : i32
    %c0_i32_0 = arith.constant 0 : i32
    return %arg0, %c0_i32, %arg1 : i32, i32, i32
  }
}

module attributes {stable_mosaic.version = 11 : i64} {
  func.func @_bn_relu_kernel(%arg0: i32, %arg1: memref<128x128xf32, #tpu.memory_space<vmem>>, %arg2: memref<1x8xf32, #tpu.memory_space<vmem>>, %arg3: memref<1x8xf32, #tpu.memory_space<vmem>>, %arg4: memref<128x8xf32, #tpu.memory_space<vmem>>) attributes {dimension_semantics = [#tpu.dimension_semantics<parallel>], iteration_bounds = array<i64: 4>, scalar_prefetch = 0 : i64, scratch_operands = 0 : i64, tpu.core_type = #tpu.core_type<tc>, window_params = [{transform_indices = @transform_0, window_bounds = array<i64: 128, 128>}, {pipeline_mode = #tpu.pipeline_mode<synchronous>, transform_indices = @transform_1, window_bounds = array<i64: 1, 8>}, {pipeline_mode = #tpu.pipeline_mode<synchronous>, transform_indices = @transform_2, window_bounds = array<i64: 1, 8>}, {transform_indices = @transform_3, window_bounds = array<i64: 128, 8>}]} {
    %c0 = arith.constant 0 : index
    %c0_0 = arith.constant 0 : index
    %0 = vector.load %arg1[%c0, %c0_0] : memref<128x128xf32, #tpu.memory_space<vmem>>, vector<128x8xf32>
    %c0_1 = arith.constant 0 : index
    %c0_2 = arith.constant 0 : index
    %1 = vector.load %arg2[%c0_1, %c0_2] : memref<1x8xf32, #tpu.memory_space<vmem>>, vector<1x8xf32>
    %2 = vector.broadcast %1 : vector<1x8xf32> to vector<128x8xf32>
    %3 = arith.mulf %0, %2 : vector<128x8xf32>
    %c0_3 = arith.constant 0 : index
    %c0_4 = arith.constant 0 : index
    %4 = vector.load %arg3[%c0_3, %c0_4] : memref<1x8xf32, #tpu.memory_space<vmem>>, vector<1x8xf32>
    %5 = vector.broadcast %4 : vector<1x8xf32> to vector<128x8xf32>
    %6 = arith.addf %3, %5 : vector<128x8xf32>
    %cst = arith.constant 0.000000e+00 : f32
    %7 = vector.broadcast %cst : f32 to vector<128x8xf32>
    %8 = arith.maximumf %6, %7 : vector<128x8xf32>
    %c0_5 = arith.constant 0 : index
    %c0_6 = arith.constant 0 : index
    %9 = vector.load %arg4[%c0_5, %c0_6] : memref<128x8xf32, #tpu.memory_space<vmem>>, vector<128x8xf32>
    tpu.vector_store %arg4[%c0_5, %c0_6], %8 {strides = array<i32>} : memref<128x8xf32, #tpu.memory_space<vmem>>, vector<128x8xf32>,
    return
  }
  func.func @transform_0(%arg0: i32) -> (i32, i32) {
    %c0_i32 = arith.constant 0 : i32
    %c0_i32_0 = arith.constant 0 : i32
    return %arg0, %c0_i32 : i32, i32
  }
  func.func @transform_1(%arg0: i32) -> (i32, i32) {
    %c0_i32 = arith.constant 0 : i32
    %c0_i32_0 = arith.constant 0 : i32
    %c0_i32_1 = arith.constant 0 : i32
    return %c0_i32, %c0_i32_0 : i32, i32
  }
  func.func @transform_2(%arg0: i32) -> (i32, i32) {
    %c0_i32 = arith.constant 0 : i32
    %c0_i32_0 = arith.constant 0 : i32
    %c0_i32_1 = arith.constant 0 : i32
    return %c0_i32, %c0_i32_0 : i32, i32
  }
  func.func @transform_3(%arg0: i32) -> (i32, i32) {
    %c0_i32 = arith.constant 0 : i32
    %c0_i32_0 = arith.constant 0 : i32
    return %arg0, %c0_i32 : i32, i32
  }
}

</mosaic_0001>

<llo_original>
// kernel: basic_conv2d.3
$region0: #{basic_conv2d.3}
  #allocation0 [shape = 'u32[]', space=smem, size = 0x4, offset = 0x4, fixed_abs, tag = 'smem constant byte address 0x4 - core index']
  #allocation1 [shape = 'u32[144,128]{1,0:T(1,128)}', space=vmem, size = 0x12000, scoped, tag = 'internal scratch']
  %s0 = inlined_call_operand.vmem [shape: f32[512,128], index: 0, kind: input, shape index: {}]
  %s1 = inlined_call_operand.vmem [shape: f32[1,8], index: 1, kind: input, shape index: {}]
  %s2 = inlined_call_operand.vmem [shape: f32[1,8], index: 2, kind: input, shape index: {}]
  %s3 = inlined_call_operand.vmem [shape: f32[512,8], index: 3, kind: output, shape index: {}]
  %s4 = sld [smem:[#allocation0]]
  $region45: #{basic_conv2d.3} parent=0
    _
  %s6 = ssub.s32 1, %s4
  %s7 = scalar_select 0, %s6, %s4
  loop: start=0, step=1, limit=6
  $region2: #{basic_conv2d.3} parent=0 // loop_pre_header
    _
  $region3: #{basic_conv2d.3} parent=0 // loop_header
    %s9 = sphi 0, %s13
    %p10 = scmp.ge.s32.totalorder %s9, 6
    %s19 = sphi 0, %s21
    %s22 = sphi 0, %s19
    %s23 = sphi 0, %s22
    %s39 = sphi 0, %s23
    %s43 = sphi 0, %s43
    %s45 = sphi 0, %s43
    %s46 = sphi 0, %s45
    %s60 = sphi 0, %s46
    %s64 = sphi 0, %s64
    %s66 = sphi 0, %s64
    %s67 = sphi 0, %s66
    %s81 = sphi 0, %s67
    %s87 = sphi 0, %s89
    %s90 = sphi 0, %s87
    %s91 = sphi 0, %s90
    %s107 = sphi 0, %s91
  $region4: #{basic_conv2d.3} parent=0 // loop_header_branch
    %12 = sbr.rel (%p10) target = $region8
  $region5: #{basic_conv2d.3} parent=0 // loop_body
    %s14 = ssub.s32 %s9, 1
    %s15 = ssub.s32 %s9, 2
    %s16 = sadd.s32 %s9, 1
    %s17 = ssub.s32 %s9, %s16
    %p18 = scmp.eq.s32.totalorder %s17, 0
    %s20 = sadd.s32 %s19, 1
    %s21 = scalar_select %p18, %s19, %s20
    %p24 = pneg %p18
    %p25 = scmp.eq.s32.totalorder %s9, 3
    %p26 = por %p24, %p25
    %p27 = scmp.ne.s32.totalorder %s19, %s22
    %p28 = scmp.eq.s32.totalorder %s9, 0
    %p29 = por %p27, %p28
    %p30 = scmp.ne.s32.totalorder %s19, %s22
    %p31 = scmp.eq.s32.totalorder %s14, 3
    %p32 = por %p30, %p31
    %p33 = scmp.ne.s32.totalorder %s22, %s23
    %p34 = scmp.eq.s32.totalorder %s14, 0
    %p35 = por %p33, %p34
    %p36 = scmp.ne.s32.totalorder %s22, %s23
    %p37 = scmp.eq.s32.totalorder %s15, 3
    %p38 = por %p36, %p37
    %p40 = scmp.ne.s32.totalorder %s23, %s39
    %p41 = scmp.eq.s32.totalorder %s15, 0
    %p42 = por %p40, %p41
    %s44 = sadd.s32 %s43, 1
    %p47 = scmp.eq.s32.totalorder %s9, 3
    %p48 = scmp.ne.s32.totalorder %s43, %s45
    %p49 = scmp.eq.s32.totalorder %s9, 0
    %p50 = por %p48, %p49
    %p51 = scmp.ne.s32.totalorder %s43, %s45
    %p52 = scmp.eq.s32.totalorder %s14, 3
    %p53 = por %p51, %p52
    %p54 = scmp.ne.s32.totalorder %s45, %s46
    %p55 = scmp.eq.s32.totalorder %s14, 0
    %p56 = por %p54, %p55
    %p57 = scmp.ne.s32.totalorder %s45, %s46
    %p58 = scmp.eq.s32.totalorder %s15, 3
    %p59 = por %p57, %p58
    %p61 = scmp.ne.s32.totalorder %s46, %s60
    %p62 = scmp.eq.s32.totalorder %s15, 0
    %p63 = por %p61, %p62
    %s65 = sadd.s32 %s64, 1
    %p68 = scmp.eq.s32.totalorder %s9, 3
    %p69 = scmp.ne.s32.totalorder %s64, %s66
    %p70 = scmp.eq.s32.totalorder %s9, 0
    %p71 = por %p69, %p70
    %p72 = scmp.ne.s32.totalorder %s64, %s66
    %p73 = scmp.eq.s32.totalorder %s14, 3
    %p74 = por %p72, %p73
    %p75 = scmp.ne.s32.totalorder %s66, %s67
    %p76 = scmp.eq.s32.totalorder %s14, 0
    %p77 = por %p75, %p76
    %p78 = scmp.ne.s32.totalorder %s66, %s67
    %p79 = scmp.eq.s32.totalorder %s15, 3
    %p80 = por %p78, %p79
    %p82 = scmp.ne.s32.totalorder %s67, %s81
    %p83 = scmp.eq.s32.totalorder %s15, 0
    %p84 = por %p82, %p83
    %s85 = ssub.s32 %s9, %s16
    %p86 = scmp.eq.s32.totalorder %s85, 0
    %s88 = sadd.s32 %s87, 1
    %s89 = scalar_select %p86, %s87, %s88
    %p92 = pneg %p86
    %p93 = scmp.eq.s32.totalorder %s9, 3
    %p94 = por %p92, %p93
    %p95 = scmp.ne.s32.totalorder %s87, %s90
    %p96 = scmp.eq.s32.totalorder %s9, 0
    %p97 = por %p95, %p96
    %p98 = scmp.ne.s32.totalorder %s87, %s90
    %p99 = scmp.eq.s32.totalorder %s14, 3
    %p100 = por %p98, %p99
    %p101 = scmp.ne.s32.totalorder %s90, %s91
    %p102 = scmp.eq.s32.totalorder %s14, 0
    %p103 = por %p101, %p102
    %p104 = scmp.ne.s32.totalorder %s90, %s91
    %p105 = scmp.eq.s32.totalorder %s15, 3
    %p106 = por %p104, %p105
    %p108 = scmp.ne.s32.totalorder %s91, %s107
    %p109 = scmp.eq.s32.totalorder %s15, 0
    %p110 = por %p108, %p109
    %p111 = scmp.le.s32.totalorder 1, %s9
    %p112 = scmp.lt.s32.totalorder %s9, 5
    %p113 = pnand %p111, %p112
    %p114 = pneg %p113
    // Predicated region
    $region9: #{basic_conv2d.3} parent=5 // pred_check
      _
    $region10: #{basic_conv2d.3} parent=5 // pred_check_branch
      %116 = sbr.rel (%p113) target = $region12
    $region11: #{basic_conv2d.3} parent=5 // pred_region
      %s117 = ssub.s32 %s9, 1
      // Predicated region
      $region13: #{basic_conv2d.3} parent=11 // pred_check
        %p118 = pneg %p56
      $region14: #{basic_conv2d.3} parent=11 // pred_check_branch
        %120 = sbr.rel (%p118) target = $region16
      $region15: #{basic_conv2d.3} parent=11 // pred_region
        _
      $region16: #{basic_conv2d.3} parent=11 // pred_fallthru
        _
      // Predicated region
      $region17: #{basic_conv2d.3} parent=11 // pred_check
        %p121 = pneg %p77
      $region18: #{basic_conv2d.3} parent=11 // pred_check_branch
        %123 = sbr.rel (%p121) target = $region20
      $region19: #{basic_conv2d.3} parent=11 // pred_region
        _
      $region20: #{basic_conv2d.3} parent=11 // pred_fallthru
        _
    $region12: #{basic_conv2d.3} parent=5 // pred_fallthru
      _
    %p124 = scmp.lt.s32.totalorder %s9, 4
    // Predicated region
    $region21: #{basic_conv2d.3} parent=5 // pred_check
      %p125 = pneg %p124
    $region22: #{basic_conv2d.3} parent=5 // pred_check_branch
      %127 = sbr.rel (%p125) target = $region24
    $region23: #{basic_conv2d.3} parent=5 // pred_region
      // Predicated region
      $region25: #{basic_conv2d.3} parent=23 // pred_check
        %p128 = pneg %p29
      $region26: #{basic_conv2d.3} parent=23 // pred_check_branch
        %130 = sbr.rel (%p128) target = $region28
      $region27: #{basic_conv2d.3} parent=23 // pred_region
        %s131 = smul.u32 16, %s9
        %p132 = scmp.lt.s32.totalorder %s131, 63
        %s133 = scalar_select %p132, %s131, 63
        %s134 = smul.addr %s133, 8
        %s135 = scalar_lea.vmem %s0, %s134
        %s136 = smul.u32 16, %s9
      $region28: #{basic_conv2d.3} parent=23 // pred_fallthru
        _
    $region24: #{basic_conv2d.3} parent=5 // pred_fallthru
      _
    %p137 = scmp.le.s32.totalorder 1, %s9
    %p138 = scmp.lt.s32.totalorder %s9, 5
    %p139 = pnand %p137, %p138
    %p140 = pneg %p139
    // Predicated region
    $region29: #{basic_conv2d.3} parent=5 // pred_check
      _
    $region30: #{basic_conv2d.3} parent=5 // pred_check_branch
      %142 = sbr.rel (%p139) target = $region32
    $region31: #{basic_conv2d.3} parent=5 // pred_region
      %s143 = ssub.s32 %s9, 1
      %s144 = smul.u32 16, %s14
      %p145 = scmp.lt.s32.totalorder %s144, 63
      %s146 = scalar_select %p145, %s144, 63
      %s147 = smul.addr %s146, 8
      %s148 = scalar_lea.vmem %s0, %s147
      %p149 = pneg %p35
      %p150 = pneg %p32
      %p151 = pneg %p56
      %p152 = pneg %p53
      %p153 = pneg %p77
      %p154 = pneg %p74
      %p155 = pneg %p103
      %p156 = pneg %p100
      %s157 = smul.u32 16, %s14
      %p158 = scmp.lt.s32.totalorder %s157, 63
      %s159 = scalar_select %p158, %s157, 63
      %s160 = smul.addr %s159, 8
      %s161 = scalar_lea.vmem %s3, %s160
      %s162 = smul.u32 16, %s14
      %p163 = scmp.lt.s32.totalorder %s162, 63
      %s164 = scalar_select %p163, %s162, 63
      %s165 = smul.addr %s164, 8
      %s166 = scalar_lea.vmem %s0, %s165
      %s167 = smul.u32 16, %s14
      %s168 = smul.u32 16, %s14
      %p169 = scmp.lt.s32.totalorder %s168, 63
      %s170 = scalar_select %p169, %s168, 63
      %s171 = smul.addr %s170, 8
      %s172 = scalar_lea.vmem %s3, %s171
      %s173 = smul.u32 16, %s14
      %v174 = vld [vmem:[%s166] sm:$0xff]
      %v175 = vld [vmem:[%s166 + $0x8] sm:$0xff]
      %v176 = vld [vmem:[%s166 + $0x10] sm:$0xff]
      %v177 = vld [vmem:[%s166 + $0x18] sm:$0xff]
      %v178 = vld [vmem:[%s166 + $0x20] sm:$0xff]
      %v179 = vld [vmem:[%s166 + $0x28] sm:$0xff]
      %v180 = vld [vmem:[%s166 + $0x30] sm:$0xff]
      %v181 = vld [vmem:[%s166 + $0x38] sm:$0xff]
      %v182 = vld [vmem:[%s166 + $0x40] sm:$0xff]
      %v183 = vld [vmem:[%s166 + $0x48] sm:$0xff]
      %v184 = vld [vmem:[%s166 + $0x50] sm:$0xff]
      %v185 = vld [vmem:[%s166 + $0x58] sm:$0xff]
      %v186 = vld [vmem:[%s166 + $0x60] sm:$0xff]
      %v187 = vld [vmem:[%s166 + $0x68] sm:$0xff]
      %v188 = vld [vmem:[%s166 + $0x70] sm:$0xff]
      %v189 = vld [vmem:[%s166 + $0x78] sm:$0xff]
      %v190 = vld [vmem:[%s1] sm:$0x1]
      %v192 = vlaneseq
      %v193 = vshrl.u32 %v192, 7
      %v194 = vsub.s32 0, %v193
      %v195 = vrot.slane %v190, %v194
      %v197 = vmul.f32 %v174, %v195
      %v198 = vmul.f32 %v175, %v195
      %v199 = vmul.f32 %v176, %v195
      %v200 = vmul.f32 %v177, %v195
      %v201 = vmul.f32 %v178, %v195
      %v202 = vmul.f32 %v179, %v195
      %v203 = vmul.f32 %v180, %v195
      %v204 = vmul.f32 %v181, %v195
      %v205 = vmul.f32 %v182, %v195
      %v206 = vmul.f32 %v183, %v195
      %v207 = vmul.f32 %v184, %v195
      %v208 = vmul.f32 %v185, %v195
      %v209 = vmul.f32 %v186, %v195
      %v210 = vmul.f32 %v187, %v195
      %v211 = vmul.f32 %v188, %v195
      %v212 = vmul.f32 %v189, %v195
      %v213 = vld [vmem:[%s2] sm:$0x1]
      %v215 = vlaneseq
      %v216 = vshrl.u32 %v215, 7
      %v217 = vsub.s32 0, %v216
      %v218 = vrot.slane %v213, %v217
      %v220 = vadd.f32 %v197, %v218
      %v221 = vadd.f32 %v198, %v218
      %v222 = vadd.f32 %v199, %v218
      %v223 = vadd.f32 %v200, %v218
      %v224 = vadd.f32 %v201, %v218
      %v225 = vadd.f32 %v202, %v218
      %v226 = vadd.f32 %v203, %v218
      %v227 = vadd.f32 %v204, %v218
      %v228 = vadd.f32 %v205, %v218
      %v229 = vadd.f32 %v206, %v218
      %v230 = vadd.f32 %v207, %v218
      %v231 = vadd.f32 %v208, %v218
      %v232 = vadd.f32 %v209, %v218
      %v233 = vadd.f32 %v210, %v218
      %v234 = vadd.f32 %v211, %v218
      %v235 = vadd.f32 %v212, %v218
      %v236 = vmax.f32 %v220, 0.0
      %v237 = vmax.f32 %v221, 0.0
      %v238 = vmax.f32 %v222, 0.0
      %v239 = vmax.f32 %v223, 0.0
      %v240 = vmax.f32 %v224, 0.0
      %v241 = vmax.f32 %v225, 0.0
      %v242 = vmax.f32 %v226, 0.0
      %v243 = vmax.f32 %v227, 0.0
      %v244 = vmax.f32 %v228, 0.0
      %v245 = vmax.f32 %v229, 0.0
      %v246 = vmax.f32 %v230, 0.0
      %v247 = vmax.f32 %v231, 0.0
      %v248 = vmax.f32 %v232, 0.0
      %v249 = vmax.f32 %v233, 0.0
      %v250 = vmax.f32 %v234, 0.0
      %v251 = vmax.f32 %v235, 0.0
      %vm252 = vcmask 64512
      %253 = vst.msk [vmem:[%s172] sm:$0xff] %vm252, %v236
      %254 = vst.msk [vmem:[%s172 + $0x8] sm:$0xff] %vm252, %v237
      %255 = vst.msk [vmem:[%s172 + $0x10] sm:$0xff] %vm252, %v238
      %256 = vst.msk [vmem:[%s172 + $0x18] sm:$0xff] %vm252, %v239
      %257 = vst.msk [vmem:[%s172 + $0x20] sm:$0xff] %vm252, %v240
      %258 = vst.msk [vmem:[%s172 + $0x28] sm:$0xff] %vm252, %v241
      %259 = vst.msk [vmem:[%s172 + $0x30] sm:$0xff] %vm252, %v242
      %260 = vst.msk [vmem:[%s172 + $0x38] sm:$0xff] %vm252, %v243
      %261 = vst.msk [vmem:[%s172 + $0x40] sm:$0xff] %vm252, %v244
      %262 = vst.msk [vmem:[%s172 + $0x48] sm:$0xff] %vm252, %v245
      %263 = vst.msk [vmem:[%s172 + $0x50] sm:$0xff] %vm252, %v246
      %264 = vst.msk [vmem:[%s172 + $0x58] sm:$0xff] %vm252, %v247
      %265 = vst.msk [vmem:[%s172 + $0x60] sm:$0xff] %vm252, %v248
      %266 = vst.msk [vmem:[%s172 + $0x68] sm:$0xff] %vm252, %v249
      %267 = vst.msk [vmem:[%s172 + $0x70] sm:$0xff] %vm252, %v250
      %268 = vst.msk [vmem:[%s172 + $0x78] sm:$0xff] %vm252, %v251
      %s269 = smul.u32 16, %s14
      %p270 = scmp.lt.s32.totalorder %s269, 63
      %s271 = scalar_select %p270, %s269, 63
      %s272 = smul.addr %s271, 8
      %s273 = scalar_lea.vmem %s3, %s272
      // Predicated region
      $region33: #{basic_conv2d.3} parent=31 // pred_check
        %p274 = pneg %p100
      $region34: #{basic_conv2d.3} parent=31 // pred_check_branch
        %276 = sbr.rel (%p274) target = $region36
      $region35: #{basic_conv2d.3} parent=31 // pred_region
        %s277 = smul.u32 16, %s14
      $region36: #{basic_conv2d.3} parent=31 // pred_fallthru
        _
    $region32: #{basic_conv2d.3} parent=5 // pred_fallthru
      _
    %p278 = scmp.le.s32.totalorder 2, %s9
    // Predicated region
    $region37: #{basic_conv2d.3} parent=5 // pred_check
      %p279 = pneg %p278
    $region38: #{basic_conv2d.3} parent=5 // pred_check_branch
      %281 = sbr.rel (%p279) target = $region40
    $region39: #{basic_conv2d.3} parent=5 // pred_region
      %s282 = ssub.s32 %s9, 2
      // Predicated region
      $region41: #{basic_conv2d.3} parent=39 // pred_check
        %p283 = pneg %p106
      $region42: #{basic_conv2d.3} parent=39 // pred_check_branch
        %285 = sbr.rel (%p283) target = $region44
      $region43: #{basic_conv2d.3} parent=39 // pred_region
        %s286 = smul.u32 16, %s15
        %p287 = scmp.lt.s32.totalorder %s286, 63
        %s288 = scalar_select %p287, %s286, 63
        %s289 = smul.addr %s288, 8
        %s290 = scalar_lea.vmem %s3, %s289
      $region44: #{basic_conv2d.3} parent=39 // pred_fallthru
        _
    $region40: #{basic_conv2d.3} parent=5 // pred_fallthru
      _
  $region6: #{basic_conv2d.3} parent=0 // loop_footer
    %s13 = sadd.s32 1, %s9
  $region7: #{basic_conv2d.3} parent=0 // loop_footer_branch
    %8 = sbr.rel target = $region3
  $region8: #{basic_conv2d.3} parent=0 // loop_exit
    _

// kernel: basic_conv2d.2
$region0: #{basic_conv2d.2}
  #allocation0 [shape = 'u32[]', space=smem, size = 0x4, offset = 0x4, fixed_abs, tag = 'smem constant byte address 0x4 - core index']
  #allocation1 [shape = 'u32[144,128]{1,0:T(1,128)}', space=vmem, size = 0x12000, scoped, tag = 'internal scratch']
  #allocation2 [shape = 'f32[128,128]{1,0:T(8,128)}', space=vmem, size = 0x10000, scoped, tag = 'scratch operand']
  %s0 = inlined_call_operand.vmem [shape: f32[512,128], index: 0, kind: input, shape index: {}]
  %s1 = inlined_call_operand.vmem [shape: f32[128,128], index: 1, kind: input, shape index: {}]
  %s2 = inlined_call_operand.vmem [shape: f32[512,128], index: 2, kind: output, shape index: {0}]
  %s3 = inlined_call_operand.vmem [shape: f32[4,2,128], index: 3, kind: output, shape index: {1}]
  %4 = xla_tuple %s2, %s3
  %s5 = sld [smem:[#allocation0]]
  $region57: #{basic_conv2d.2} parent=0
    _
  %s7 = ssub.s32 1, %s5
  %s8 = scalar_select 0, %s7, %s5
  loop: start=0, step=1, limit=6
  $region2: #{basic_conv2d.2} parent=0 // loop_pre_header
    _
  $region3: #{basic_conv2d.2} parent=0 // loop_header
    %s10 = sphi 0, %s14
    %p11 = scmp.ge.s32.totalorder %s10, 6
    %s17 = sphi 0, %s36
    %s18 = sphi 0, %s32
    %s19 = sphi 0, %s28
    %s20 = sphi 0, %s17
    %s21 = sphi 0, %s18
    %s22 = sphi 0, %s19
    %s23 = sphi 0, %s20
    %s24 = sphi 0, %s21
    %s25 = sphi 0, %s22
    %s41 = sphi 0, %s43
    %s44 = sphi 0, %s41
    %s45 = sphi 0, %s44
    %s61 = sphi 0, %s45
    %s69 = sphi 0, %s71
    %s72 = sphi 0, %s69
    %s73 = sphi 0, %s72
    %s89 = sphi 0, %s73
    %s97 = sphi 0, %s99
    %s100 = sphi 0, %s97
    %s101 = sphi 0, %s100
    %s117 = sphi 0, %s101
    %s125 = sphi 0, %s127
    %s128 = sphi 0, %s125
    %s129 = sphi 0, %s128
    %s145 = sphi 0, %s129
  $region4: #{basic_conv2d.2} parent=0 // loop_header_branch
    %13 = sbr.rel (%p11) target = $region8
  $region5: #{basic_conv2d.2} parent=0 // loop_body
    %s15 = ssub.s32 %s10, 1
    %s16 = ssub.s32 %s10, 2
    %s26 = sadd.s32 1, %s19
    %p27 = scmp.ge.s32.totalorder %s26, 1
    %s28 = scalar_select %p27, 0, %s26
    %s29 = sadd.s32 1, %s18
    %s30 = scalar_select %p27, %s29, %s18
    %p31 = scmp.ge.s32.totalorder %s30, 1
    %s32 = scalar_select %p31, 0, %s30
    %s33 = sadd.s32 1, %s17
    %s34 = scalar_select %p31, %s33, %s17
    %p35 = scmp.ge.s32.totalorder %s34, 4
    %s36 = scalar_select %p35, 0, %s34
    %s37 = ssub.s32 %s17, %s36
    %s38 = ssub.s32 %s19, %s28
    %s39 = sor.u32 %s37, %s38
    %p40 = scmp.eq.s32.totalorder %s39, 0
    %s42 = sadd.s32 %s41, 1
    %s43 = scalar_select %p40, %s41, %s42
    %p46 = pneg %p40
    %p47 = scmp.eq.s32.totalorder %s10, 3
    %p48 = por %p46, %p47
    %p49 = scmp.ne.s32.totalorder %s41, %s44
    %p50 = scmp.eq.s32.totalorder %s10, 0
    %p51 = por %p49, %p50
    %p52 = scmp.ne.s32.totalorder %s41, %s44
    %p53 = scmp.eq.s32.totalorder %s15, 3
    %p54 = por %p52, %p53
    %p55 = scmp.ne.s32.totalorder %s44, %s45
    %p56 = scmp.eq.s32.totalorder %s15, 0
    %p57 = por %p55, %p56
    %p58 = scmp.ne.s32.totalorder %s44, %s45
    %p59 = scmp.eq.s32.totalorder %s16, 3
    %p60 = por %p58, %p59
    %p62 = scmp.ne.s32.totalorder %s45, %s61
    %p63 = scmp.eq.s32.totalorder %s16, 0
    %p64 = por %p62, %p63
    %s65 = ssub.s32 %s19, %s28
    %s66 = ssub.s32 %s18, %s32
    %s67 = sor.u32 %s65, %s66
    %p68 = scmp.eq.s32.totalorder %s67, 0
    %s70 = sadd.s32 %s69, 1
    %s71 = scalar_select %p68, %s69, %s70
    %p74 = pneg %p68
    %p75 = scmp.eq.s32.totalorder %s10, 3
    %p76 = por %p74, %p75
    %p77 = scmp.ne.s32.totalorder %s69, %s72
    %p78 = scmp.eq.s32.totalorder %s10, 0
    %p79 = por %p77, %p78
    %p80 = scmp.ne.s32.totalorder %s69, %s72
    %p81 = scmp.eq.s32.totalorder %s15, 3
    %p82 = por %p80, %p81
    %p83 = scmp.ne.s32.totalorder %s72, %s73
    %p84 = scmp.eq.s32.totalorder %s15, 0
    %p85 = por %p83, %p84
    %p86 = scmp.ne.s32.totalorder %s72, %s73
    %p87 = scmp.eq.s32.totalorder %s16, 3
    %p88 = por %p86, %p87
    %p90 = scmp.ne.s32.totalorder %s73, %s89
    %p91 = scmp.eq.s32.totalorder %s16, 0
    %p92 = por %p90, %p91
    %s93 = ssub.s32 %s17, %s36
    %s94 = ssub.s32 %s18, %s32
    %s95 = sor.u32 %s93, %s94
    %p96 = scmp.eq.s32.totalorder %s95, 0
    %s98 = sadd.s32 %s97, 1
    %s99 = scalar_select %p96, %s97, %s98
    %p102 = pneg %p96
    %p103 = scmp.eq.s32.totalorder %s10, 3
    %p104 = por %p102, %p103
    %p105 = scmp.ne.s32.totalorder %s97, %s100
    %p106 = scmp.eq.s32.totalorder %s10, 0
    %p107 = por %p105, %p106
    %p108 = scmp.ne.s32.totalorder %s97, %s100
    %p109 = scmp.eq.s32.totalorder %s15, 3
    %p110 = por %p108, %p109
    %p111 = scmp.ne.s32.totalorder %s100, %s101
    %p112 = scmp.eq.s32.totalorder %s15, 0
    %p113 = por %p111, %p112
    %p114 = scmp.ne.s32.totalorder %s100, %s101
    %p115 = scmp.eq.s32.totalorder %s16, 3
    %p116 = por %p114, %p115
    %p118 = scmp.ne.s32.totalorder %s101, %s117
    %p119 = scmp.eq.s32.totalorder %s16, 0
    %p120 = por %p118, %p119
    %s121 = ssub.s32 %s17, %s36
    %s122 = ssub.s32 %s18, %s32
    %s123 = sor.u32 %s121, %s122
    %p124 = scmp.eq.s32.totalorder %s123, 0
    %s126 = sadd.s32 %s125, 1
    %s127 = scalar_select %p124, %s125, %s126
    %p130 = pneg %p124
    %p131 = scmp.eq.s32.totalorder %s10, 3
    %p132 = por %p130, %p131
    %p133 = scmp.ne.s32.totalorder %s125, %s128
    %p134 = scmp.eq.s32.totalorder %s10, 0
    %p135 = por %p133, %p134
    %p136 = scmp.ne.s32.totalorder %s125, %s128
    %p137 = scmp.eq.s32.totalorder %s15, 3
    %p138 = por %p136, %p137
    %p139 = scmp.ne.s32.totalorder %s128, %s129
    %p140 = scmp.eq.s32.totalorder %s15, 0
    %p141 = por %p139, %p140
    %p142 = scmp.ne.s32.totalorder %s128, %s129
    %p143 = scmp.eq.s32.totalorder %s16, 3
    %p144 = por %p142, %p143
    %p146 = scmp.ne.s32.totalorder %s129, %s145
    %p147 = scmp.eq.s32.totalorder %s16, 0
    %p148 = por %p146, %p147
    %p149 = scmp.le.s32.totalorder 1, %s10
    %p150 = scmp.lt.s32.totalorder %s10, 5
    %p151 = pnand %p149, %p150
    %p152 = pneg %p151
    // Predicated region
    $region9: #{basic_conv2d.2} parent=5 // pred_check
      _
    $region10: #{basic_conv2d.2} parent=5 // pred_check_branch
      %154 = sbr.rel (%p151) target = $region12
    $region11: #{basic_conv2d.2} parent=5 // pred_region
      %s155 = ssub.s32 %s10, 1
      // Predicated region
      $region13: #{basic_conv2d.2} parent=11 // pred_check
        %p156 = pneg %p85
      $region14: #{basic_conv2d.2} parent=11 // pred_check_branch
        %158 = sbr.rel (%p156) target = $region16
      $region15: #{basic_conv2d.2} parent=11 // pred_region
        %s159 = smul.u32 16, %s22
        %p160 = scmp.lt.s32.totalorder %s159, 15
        %s161 = scalar_select %p160, %s159, 15
        %p162 = scmp.lt.s32.totalorder %s21, 0
        %s163 = scalar_select %p162, %s21, 0
        %s164 = sadd.s32 %s163, %s161
        %s165 = smul.addr %s164, 8
        %s166 = scalar_lea.vmem %s1, %s165
        %s167 = smul.u32 16, %s22
      $region16: #{basic_conv2d.2} parent=11 // pred_fallthru
        _
    $region12: #{basic_conv2d.2} parent=5 // pred_fallthru
      _
    %p168 = scmp.lt.s32.totalorder %s10, 4
    // Predicated region
    $region17: #{basic_conv2d.2} parent=5 // pred_check
      %p169 = pneg %p168
    $region18: #{basic_conv2d.2} parent=5 // pred_check_branch
      %171 = sbr.rel (%p169) target = $region20
    $region19: #{basic_conv2d.2} parent=5 // pred_region
      // Predicated region
      $region21: #{basic_conv2d.2} parent=19 // pred_check
        %p172 = pneg %p51
      $region22: #{basic_conv2d.2} parent=19 // pred_check_branch
        %174 = sbr.rel (%p172) target = $region24
      $region23: #{basic_conv2d.2} parent=19 // pred_region
        %s175 = smul.u32 16, %s17
        %p176 = scmp.lt.s32.totalorder %s175, 63
        %s177 = scalar_select %p176, %s175, 63
        %p178 = scmp.lt.s32.totalorder %s19, 0
        %s179 = scalar_select %p178, %s19, 0
        %s180 = sadd.s32 %s179, %s177
        %s181 = smul.addr %s180, 8
        %s182 = scalar_lea.vmem %s0, %s181
        %s183 = smul.u32 16, %s17
      $region24: #{basic_conv2d.2} parent=19 // pred_fallthru
        _
    $region20: #{basic_conv2d.2} parent=5 // pred_fallthru
      _
    %p184 = scmp.le.s32.totalorder 1, %s10
    %p185 = scmp.lt.s32.totalorder %s10, 5
    %p186 = pnand %p184, %p185
    %p187 = pneg %p186
    // Predicated region
    $region25: #{basic_conv2d.2} parent=5 // pred_check
      _
    $region26: #{basic_conv2d.2} parent=5 // pred_check_branch
      %189 = sbr.rel (%p186) target = $region28
    $region27: #{basic_conv2d.2} parent=5 // pred_region
      %s190 = ssub.s32 %s10, 1
      %s191 = smul.u32 16, %s20
      %p192 = scmp.lt.s32.totalorder %s191, 63
      %s193 = scalar_select %p192, %s191, 63
      %p194 = scmp.lt.s32.totalorder %s22, 0
      %s195 = scalar_select %p194, %s22, 0
      %s196 = sadd.s32 %s195, %s193
      %s197 = smul.addr %s196, 8
      %s198 = scalar_lea.vmem %s0, %s197
      %p199 = pneg %p57
      %p200 = pneg %p54
      %s201 = smul.u32 16, %s22
      %p202 = scmp.lt.s32.totalorder %s201, 15
      %s203 = scalar_select %p202, %s201, 15
      %p204 = scmp.lt.s32.totalorder %s21, 0
      %s205 = scalar_select %p204, %s21, 0
      %s206 = sadd.s32 %s205, %s203
      %s207 = smul.addr %s206, 8
      %s208 = scalar_lea.vmem %s1, %s207
      %p209 = pneg %p85
      %p210 = pneg %p82
      %p211 = pneg %p113
      %p212 = pneg %p110
      %s213 = smul.u32 16, %s20
      %p214 = scmp.lt.s32.totalorder %s213, 63
      %s215 = scalar_select %p214, %s213, 63
      %p216 = scmp.lt.s32.totalorder %s21, 0
      %s217 = scalar_select %p216, %s21, 0
      %s218 = sadd.s32 %s217, %s215
      %s219 = smul.addr %s218, 8
      %s220 = scalar_lea.vmem %s2, %s219
      %p221 = pneg %p141
      %p222 = pneg %p138
      %p223 = scmp.lt.s32.totalorder %s20, 3
      %s224 = scalar_select %p223, %s20, 3
      %p225 = scmp.lt.s32.totalorder %s21, 0
      %s226 = scalar_select %p225, %s21, 0
      %s227 = sadd.s32 %s226, %s224
      %s228 = smul.addr %s227, 2
      %s229 = scalar_lea.vmem %s3, %s228
      %s230 = smul.u32 16, %s20
      %p231 = scmp.lt.s32.totalorder %s230, 63
      %s232 = scalar_select %p231, %s230, 63
      %p233 = scmp.lt.s32.totalorder %s22, 0
      %s234 = scalar_select %p233, %s22, 0
      %s235 = sadd.s32 %s234, %s232
      %s236 = smul.addr %s235, 8
      %s237 = scalar_lea.vmem %s0, %s236
      %s238 = smul.u32 16, %s20
      %s239 = smul.u32 16, %s22
      %p240 = scmp.lt.s32.totalorder %s239, 15
      %s241 = scalar_select %p240, %s239, 15
      %p242 = scmp.lt.s32.totalorder %s21, 0
      %s243 = scalar_select %p242, %s21, 0
      %s244 = sadd.s32 %s243, %s241
      %s245 = smul.addr %s244, 8
      %s246 = scalar_lea.vmem %s1, %s245
      %s247 = smul.u32 16, %s22
      %s248 = smul.u32 16, %s20
      %p249 = scmp.lt.s32.totalorder %s248, 63
      %s250 = scalar_select %p249, %s248, 63
      %p251 = scmp.lt.s32.totalorder %s21, 0
      %s252 = scalar_select %p251, %s21, 0
      %s253 = sadd.s32 %s252, %s250
      %s254 = smul.addr %s253, 8
      %s255 = scalar_lea.vmem %s2, %s254
      %s256 = smul.u32 16, %s20
      %p257 = scmp.lt.s32.totalorder %s20, 3
      %s258 = scalar_select %p257, %s20, 3
      %p259 = scmp.lt.s32.totalorder %s21, 0
      %s260 = scalar_select %p259, %s21, 0
      %s261 = sadd.s32 %s260, %s258
      %s262 = smul.addr %s261, 2
      %s263 = scalar_lea.vmem %s3, %s262
      %p264 = scmp.eq.s32.totalorder %s22, 0
      // Predicated region
      $region29: #{basic_conv2d.2} parent=27 // pred_check
        %p265 = pneg %p264
      $region30: #{basic_conv2d.2} parent=27 // pred_check_branch
        %267 = sbr.rel (%p265) target = $region32
      $region31: #{basic_conv2d.2} parent=27 // pred_region
        %268 = vst [vmem:[#allocation2] sm:$0xff] 0.0
        %269 = vst [vmem:[#allocation2 + $0x8] sm:$0xff] 0.0
        %270 = vst [vmem:[#allocation2 + $0x10] sm:$0xff] 0.0
        %271 = vst [vmem:[#allocation2 + $0x18] sm:$0xff] 0.0
        %272 = vst [vmem:[#allocation2 + $0x20] sm:$0xff] 0.0
        %273 = vst [vmem:[#allocation2 + $0x28] sm:$0xff] 0.0
        %274 = vst [vmem:[#allocation2 + $0x30] sm:$0xff] 0.0
        %275 = vst [vmem:[#allocation2 + $0x38] sm:$0xff] 0.0
        %276 = vst [vmem:[#allocation2 + $0x40] sm:$0xff] 0.0
        %277 = vst [vmem:[#allocation2 + $0x48] sm:$0xff] 0.0
        %278 = vst [vmem:[#allocation2 + $0x50] sm:$0xff] 0.0
        %279 = vst [vmem:[#allocation2 + $0x58] sm:$0xff] 0.0
        %280 = vst [vmem:[#allocation2 + $0x60] sm:$0xff] 0.0
        %281 = vst [vmem:[#allocation2 + $0x68] sm:$0xff] 0.0
        %282 = vst [vmem:[#allocation2 + $0x70] sm:$0xff] 0.0
        %283 = vst [vmem:[#allocation2 + $0x78] sm:$0xff] 0.0
      $region32: #{basic_conv2d.2} parent=27 // pred_fallthru
        _
      %v284 = vld [vmem:[#allocation2] sm:$0xff]
      %v285 = vld [vmem:[#allocation2 + $0x8] sm:$0xff]
      %v286 = vld [vmem:[#allocation2 + $0x10] sm:$0xff]
      %v287 = vld [vmem:[#allocation2 + $0x18] sm:$0xff]
      %v288 = vld [vmem:[#allocation2 + $0x20] sm:$0xff]
      %v289 = vld [vmem:[#allocation2 + $0x28] sm:$0xff]
      %v290 = vld [vmem:[#allocation2 + $0x30] sm:$0xff]
      %v291 = vld [vmem:[#allocation2 + $0x38] sm:$0xff]
      %v292 = vld [vmem:[#allocation2 + $0x40] sm:$0xff]
      %v293 = vld [vmem:[#allocation2 + $0x48] sm:$0xff]
      %v294 = vld [vmem:[#allocation2 + $0x50] sm:$0xff]
      %v295 = vld [vmem:[#allocation2 + $0x58] sm:$0xff]
      %v296 = vld [vmem:[#allocation2 + $0x60] sm:$0xff]
      %v297 = vld [vmem:[#allocation2 + $0x68] sm:$0xff]
      %v298 = vld [vmem:[#allocation2 + $0x70] sm:$0xff]
      %v299 = vld [vmem:[#allocation2 + $0x78] sm:$0xff]
      %v300 = vld [vmem:[%s237] sm:$0xff]
      %v301 = vld [vmem:[%s237 + $0x8] sm:$0xff]
      %v302 = vld [vmem:[%s237 + $0x10] sm:$0xff]
      %v303 = vld [vmem:[%s237 + $0x18] sm:$0xff]
      %v304 = vld [vmem:[%s237 + $0x20] sm:$0xff]
      %v305 = vld [vmem:[%s237 + $0x28] sm:$0xff]
      %v306 = vld [vmem:[%s237 + $0x30] sm:$0xff]
      %v307 = vld [vmem:[%s237 + $0x38] sm:$0xff]
      %v308 = vld [vmem:[%s237 + $0x40] sm:$0xff]
      %v309 = vld [vmem:[%s237 + $0x48] sm:$0xff]
      %v310 = vld [vmem:[%s237 + $0x50] sm:$0xff]
      %v311 = vld [vmem:[%s237 + $0x58] sm:$0xff]
      %v312 = vld [vmem:[%s237 + $0x60] sm:$0xff]
      %v313 = vld [vmem:[%s237 + $0x68] sm:$0xff]
      %v314 = vld [vmem:[%s237 + $0x70] sm:$0xff]
      %v315 = vld [vmem:[%s237 + $0x78] sm:$0xff]
      %v316 = vld [vmem:[%s246] sm:$0xff]
      %v317 = vld [vmem:[%s246 + $0x8] sm:$0xff]
      %v318 = vld [vmem:[%s246 + $0x10] sm:$0xff]
      %v319 = vld [vmem:[%s246 + $0x18] sm:$0xff]
      %v320 = vld [vmem:[%s246 + $0x20] sm:$0xff]
      %v321 = vld [vmem:[%s246 + $0x28] sm:$0xff]
      %v322 = vld [vmem:[%s246 + $0x30] sm:$0xff]
      %v323 = vld [vmem:[%s246 + $0x38] sm:$0xff]
      %v324 = vld [vmem:[%s246 + $0x40] sm:$0xff]
      %v325 = vld [vmem:[%s246 + $0x48] sm:$0xff]
      %v326 = vld [vmem:[%s246 + $0x50] sm:$0xff]
      %v327 = vld [vmem:[%s246 + $0x58] sm:$0xff]
      %v328 = vld [vmem:[%s246 + $0x60] sm:$0xff]
      %v329 = vld [vmem:[%s246 + $0x68] sm:$0xff]
      %v330 = vld [vmem:[%s246 + $0x70] sm:$0xff]
      %v331 = vld [vmem:[%s246 + $0x78] sm:$0xff]
      %332 = vmatprep.subr.mxu0 0.0
      %333 = vmatpush1.msra.mxu0 %v331
      %334 = vmatprep.subr.mxu0 0.0
      %335 = vmatpush1.msra.mxu0 %v330
      %336 = vmatprep.subr.mxu0 0.0
      %337 = vmatpush1.msra.mxu0 %v329
      %338 = vmatprep.subr.mxu0 0.0
      %339 = vmatpush1.msra.mxu0 %v328
      %340 = vmatprep.subr.mxu0 0.0
      %341 = vmatpush1.msra.mxu0 %v327
      %342 = vmatprep.subr.mxu0 0.0
      %343 = vmatpush1.msra.mxu0 %v326
      %344 = vmatprep.subr.mxu0 0.0
      %345 = vmatpush1.msra.mxu0 %v325
      %346 = vmatprep.subr.mxu0 0.0
      %347 = vmatpush1.msra.mxu0 %v324
      %348 = vmatprep.subr.mxu0 0.0
      %349 = vmatpush1.msra.mxu0 %v323
      %350 = vmatprep.subr.mxu0 0.0
      %351 = vmatpush1.msra.mxu0 %v322
      %352 = vmatprep.subr.mxu0 0.0
      %353 = vmatpush1.msra.mxu0 %v321
      %354 = vmatprep.subr.mxu0 0.0
      %355 = vmatpush1.msra.mxu0 %v320
      %356 = vmatprep.subr.mxu0 0.0
      %357 = vmatpush1.msra.mxu0 %v319
      %358 = vmatprep.subr.mxu0 0.0
      %359 = vmatpush1.msra.mxu0 %v318
      %360 = vmatprep.subr.mxu0 0.0
      %361 = vmatpush1.msra.mxu0 %v317
      %362 = vmatprep.subr.mxu0 0.0
      %363 = vmatpush1.msra.mxu0 %v316
      %364 = vmatprep.subr.mxu0 0.0
      %365 = vmatpush2.msra.mxu0 0.0
      %366 = vmatprep.subr.mxu0 0.0
      %367 = vmatpush2.msra.mxu0 0.0
      %368 = vmatprep.subr.mxu0 0.0
      %369 = vmatpush2.msra.mxu0 0.0
      %370 = vmatprep.subr.mxu0 0.0
      %371 = vmatpush2.msra.mxu0 0.0
      %372 = vmatprep.subr.mxu0 0.0
      %373 = vmatpush2.msra.mxu0 0.0
      %374 = vmatprep.subr.mxu0 0.0
      %375 = vmatpush2.msra.mxu0 0.0
      %376 = vmatprep.subr.mxu0 0.0
      %377 = vmatpush2.msra.mxu0 0.0
      %378 = vmatprep.subr.mxu0 0.0
      %379 = vmatpush2.msra.mxu0 0.0
      %380 = vmatprep.subr.mxu0 0.0
      %381 = vmatpush2.msra.mxu0 0.0
      %382 = vmatprep.subr.mxu0 0.0
      %383 = vmatpush2.msra.mxu0 0.0
      %384 = vmatprep.subr.mxu0 0.0
      %385 = vmatpush2.msra.mxu0 0.0
      %386 = vmatprep.subr.mxu0 0.0
      %387 = vmatpush2.msra.mxu0 0.0
      %388 = vmatprep.subr.mxu0 0.0
      %389 = vmatpush2.msra.mxu0 0.0
      %390 = vmatprep.subr.mxu0 0.0
      %391 = vmatpush2.msra.mxu0 0.0
      %392 = vmatprep.subr.mxu0 0.0
      %393 = vmatpush2.msra.mxu0 0.0
      %394 = vmatprep.subr.mxu0 0.0
      %395 = vmatpush2.msra.mxu0 0.0
      %396 = vmatprep.mubr.f32.mxu0 0.0
      %397 = vmatmul.mubr.f32.gmra.mxu0 %v300
      %v398 = vpop.f32.mrf.mxu0
      %v399 = vadd.f32 0.0, %v398
      %v400 = vpop.f32.mrf.mxu0
      %401 = vmatprep.mubr.f32.mxu0 0.0
      %402 = vmatmul.mubr.f32.gmra.mxu0 %v301
      %v403 = vpop.f32.mrf.mxu0
      %v404 = vadd.f32 0.0, %v403
      %v405 = vpop.f32.mrf.mxu0
      %406 = vmatprep.mubr.f32.mxu0 0.0
      %407 = vmatmul.mubr.f32.gmra.mxu0 %v302
      %v408 = vpop.f32.mrf.mxu0
      %v409 = vadd.f32 0.0, %v408
      %v410 = vpop.f32.mrf.mxu0
      %411 = vmatprep.mubr.f32.mxu0 0.0
      %412 = vmatmul.mubr.f32.gmra.mxu0 %v303
      %v413 = vpop.f32.mrf.mxu0
      %v414 = vadd.f32 0.0, %v413
      %v415 = vpop.f32.mrf.mxu0
      %416 = vmatprep.mubr.f32.mxu0 0.0
      %417 = vmatmul.mubr.f32.gmra.mxu0 %v304
      %v418 = vpop.f32.mrf.mxu0
      %v419 = vadd.f32 0.0, %v418
      %v420 = vpop.f32.mrf.mxu0
      %421 = vmatprep.mubr.f32.mxu0 0.0
      %422 = vmatmul.mubr.f32.gmra.mxu0 %v305
      %v423 = vpop.f32.mrf.mxu0
      %v424 = vadd.f32 0.0, %v423
      %v425 = vpop.f32.mrf.mxu0
      %426 = vmatprep.mubr.f32.mxu0 0.0
      %427 = vmatmul.mubr.f32.gmra.mxu0 %v306
      %v428 = vpop.f32.mrf.mxu0
      %v429 = vadd.f32 0.0, %v428
      %v430 = vpop.f32.mrf.mxu0
      %431 = vmatprep.mubr.f32.mxu0 0.0
      %432 = vmatmul.mubr.f32.gmra.mxu0 %v307
      %v433 = vpop.f32.mrf.mxu0
      %v434 = vadd.f32 0.0, %v433
      %v435 = vpop.f32.mrf.mxu0
      %436 = vmatprep.mubr.f32.mxu0 0.0
      %437 = vmatmul.mubr.f32.gmra.mxu0 %v308
      %v438 = vpop.f32.mrf.mxu0
      %v439 = vadd.f32 0.0, %v438
      %v440 = vpop.f32.mrf.mxu0
      %441 = vmatprep.mubr.f32.mxu0 0.0
      %442 = vmatmul.mubr.f32.gmra.mxu0 %v309
      %v443 = vpop.f32.mrf.mxu0
      %v444 = vadd.f32 0.0, %v443
      %v445 = vpop.f32.mrf.mxu0
      %446 = vmatprep.mubr.f32.mxu0 0.0
      %447 = vmatmul.mubr.f32.gmra.mxu0 %v310
      %v448 = vpop.f32.mrf.mxu0
      %v449 = vadd.f32 0.0, %v448
      %v450 = vpop.f32.mrf.mxu0
      %451 = vmatprep.mubr.f32.mxu0 0.0
      %452 = vmatmul.mubr.f32.gmra.mxu0 %v311
      %v453 = vpop.f32.mrf.mxu0
      %v454 = vadd.f32 0.0, %v453
      %v455 = vpop.f32.mrf.mxu0
      %456 = vmatprep.mubr.f32.mxu0 0.0
      %457 = vmatmul.mubr.f32.gmra.mxu0 %v312
      %v458 = vpop.f32.mrf.mxu0
      %v459 = vadd.f32 0.0, %v458
      %v460 = vpop.f32.mrf.mxu0
      %461 = vmatprep.mubr.f32.mxu0 0.0
      %462 = vmatmul.mubr.f32.gmra.mxu0 %v313
      %v463 = vpop.f32.mrf.mxu0
      %v464 = vadd.f32 0.0, %v463
      %v465 = vpop.f32.mrf.mxu0
      %466 = vmatprep.mubr.f32.mxu0 0.0
      %467 = vmatmul.mubr.f32.gmra.mxu0 %v314
      %v468 = vpop.f32.mrf.mxu0
      %v469 = vadd.f32 0.0, %v468
      %v470 = vpop.f32.mrf.mxu0
      %471 = vmatprep.mubr.f32.mxu0 0.0
      %472 = vmatmul.mubr.f32.gmra.mxu0 %v315
      %v473 = vpop.f32.mrf.mxu0
      %v474 = vadd.f32 0.0, %v473
      %v475 = vpop.f32.mrf.mxu0
      %476 = vdwg.mxu0
      %v477 = vadd.f32 %v284, %v399
      %v478 = vadd.f32 %v285, %v404
      %v479 = vadd.f32 %v286, %v409
      %v480 = vadd.f32 %v287, %v414
      %v481 = vadd.f32 %v288, %v419
      %v482 = vadd.f32 %v289, %v424
      %v483 = vadd.f32 %v290, %v429
      %v484 = vadd.f32 %v291, %v434
      %v485 = vadd.f32 %v292, %v439
      %v486 = vadd.f32 %v293, %v444
      %v487 = vadd.f32 %v294, %v449
      %v488 = vadd.f32 %v295, %v454
      %v489 = vadd.f32 %v296, %v459
      %v490 = vadd.f32 %v297, %v464
      %v491 = vadd.f32 %v298, %v469
      %v492 = vadd.f32 %v299, %v474
      %493 = vst [vmem:[#allocation2] sm:$0xff] %v477
      %494 = vst [vmem:[#allocation2 + $0x8] sm:$0xff] %v478
      %495 = vst [vmem:[#allocation2 + $0x10] sm:$0xff] %v479
      %496 = vst [vmem:[#allocation2 + $0x18] sm:$0xff] %v480
      %497 = vst [vmem:[#allocation2 + $0x20] sm:$0xff] %v481
      %498 = vst [vmem:[#allocation2 + $0x28] sm:$0xff] %v482
      %499 = vst [vmem:[#allocation2 + $0x30] sm:$0xff] %v483
      %500 = vst [vmem:[#allocation2 + $0x38] sm:$0xff] %v484
      %501 = vst [vmem:[#allocation2 + $0x40] sm:$0xff] %v485
      %502 = vst [vmem:[#allocation2 + $0x48] sm:$0xff] %v486
      %503 = vst [vmem:[#allocation2 + $0x50] sm:$0xff] %v487
      %504 = vst [vmem:[#allocation2 + $0x58] sm:$0xff] %v488
      %505 = vst [vmem:[#allocation2 + $0x60] sm:$0xff] %v489
      %506 = vst [vmem:[#allocation2 + $0x68] sm:$0xff] %v490
      %507 = vst [vmem:[#allocation2 + $0x70] sm:$0xff] %v491
      %508 = vst [vmem:[#allocation2 + $0x78] sm:$0xff] %v492
      // Predicated region
      $region33: #{basic_conv2d.2} parent=27 // pred_check
        %p509 = pneg %p264
      $region34: #{basic_conv2d.2} parent=27 // pred_check_branch
        %511 = sbr.rel (%p509) target = $region36
      $region35: #{basic_conv2d.2} parent=27 // pred_region
        %v512 = vld [vmem:[#allocation2] sm:$0xff]
        %v513 = vld [vmem:[#allocation2 + $0x8] sm:$0xff]
        %v514 = vld [vmem:[#allocation2 + $0x10] sm:$0xff]
        %v515 = vld [vmem:[#allocation2 + $0x18] sm:$0xff]
        %v516 = vld [vmem:[#allocation2 + $0x20] sm:$0xff]
        %v517 = vld [vmem:[#allocation2 + $0x28] sm:$0xff]
        %v518 = vld [vmem:[#allocation2 + $0x30] sm:$0xff]
        %v519 = vld [vmem:[#allocation2 + $0x38] sm:$0xff]
        %v520 = vld [vmem:[#allocation2 + $0x40] sm:$0xff]
        %v521 = vld [vmem:[#allocation2 + $0x48] sm:$0xff]
        %v522 = vld [vmem:[#allocation2 + $0x50] sm:$0xff]
        %v523 = vld [vmem:[#allocation2 + $0x58] sm:$0xff]
        %v524 = vld [vmem:[#allocation2 + $0x60] sm:$0xff]
        %v525 = vld [vmem:[#allocation2 + $0x68] sm:$0xff]
        %v526 = vld [vmem:[#allocation2 + $0x70] sm:$0xff]
        %v527 = vld [vmem:[#allocation2 + $0x78] sm:$0xff]
        %528 = vst [vmem:[%s255] sm:$0xff] %v512
        %529 = vst [vmem:[%s255 + $0x8] sm:$0xff] %v513
        %530 = vst [vmem:[%s255 + $0x10] sm:$0xff] %v514
        %531 = vst [vmem:[%s255 + $0x18] sm:$0xff] %v515
        %532 = vst [vmem:[%s255 + $0x20] sm:$0xff] %v516
        %533 = vst [vmem:[%s255 + $0x28] sm:$0xff] %v517
        %534 = vst [vmem:[%s255 + $0x30] sm:$0xff] %v518
        %535 = vst [vmem:[%s255 + $0x38] sm:$0xff] %v519
        %536 = vst [vmem:[%s255 + $0x40] sm:$0xff] %v520
        %537 = vst [vmem:[%s255 + $0x48] sm:$0xff] %v521
        %538 = vst [vmem:[%s255 + $0x50] sm:$0xff] %v522
        %539 = vst [vmem:[%s255 + $0x58] sm:$0xff] %v523
        %540 = vst [vmem:[%s255 + $0x60] sm:$0xff] %v524
        %541 = vst [vmem:[%s255 + $0x68] sm:$0xff] %v525
        %542 = vst [vmem:[%s255 + $0x70] sm:$0xff] %v526
        %543 = vst [vmem:[%s255 + $0x78] sm:$0xff] %v527
        %v544 = vadd.f32 %v512, %v513
        %v545 = vadd.f32 %v544, %v514
        %v546 = vadd.f32 %v545, %v515
        %v547 = vadd.f32 %v546, %v516
        %v548 = vadd.f32 %v547, %v517
        %v549 = vadd.f32 %v548, %v518
        %v550 = vadd.f32 %v549, %v519
        %v551 = vadd.f32 %v550, %v520
        %v552 = vadd.f32 %v551, %v521
        %v553 = vadd.f32 %v552, %v522
        %v554 = vadd.f32 %v553, %v523
        %v555 = vadd.f32 %v554, %v524
        %v556 = vadd.f32 %v555, %v525
        %v557 = vadd.f32 %v556, %v526
        %v558 = vadd.f32 %v557, %v527
        %v559 = vrot.slane %v558, 4
        %v560 = vadd.f32 %v558, %v559
        %v561 = vrot.slane %v560, 2
        %v562 = vadd.f32 %v560, %v561
        %v563 = vrot.slane %v562, 1
        %v564 = vadd.f32 %v562, %v563
        %v565 = vmul.f32 %v512, %v512
        %v566 = vmul.f32 %v513, %v513
        %v567 = vmul.f32 %v514, %v514
        %v568 = vmul.f32 %v515, %v515
        %v569 = vmul.f32 %v516, %v516
        %v570 = vmul.f32 %v517, %v517
        %v571 = vmul.f32 %v518, %v518
        %v572 = vmul.f32 %v519, %v519
        %v573 = vmul.f32 %v520, %v520
        %v574 = vmul.f32 %v521, %v521
        %v575 = vmul.f32 %v522, %v522
        %v576 = vmul.f32 %v523, %v523
        %v577 = vmul.f32 %v524, %v524
        %v578 = vmul.f32 %v525, %v525
        %v579 = vmul.f32 %v526, %v526
        %v580 = vmul.f32 %v527, %v527
        %v581 = vadd.f32 %v565, %v566
        %v582 = vadd.f32 %v581, %v567
        %v583 = vadd.f32 %v582, %v568
        %v584 = vadd.f32 %v583, %v569
        %v585 = vadd.f32 %v584, %v570
        %v586 = vadd.f32 %v585, %v571
        %v587 = vadd.f32 %v586, %v572
        %v588 = vadd.f32 %v587, %v573
        %v589 = vadd.f32 %v588, %v574
        %v590 = vadd.f32 %v589, %v575
        %v591 = vadd.f32 %v590, %v576
        %v592 = vadd.f32 %v591, %v577
        %v593 = vadd.f32 %v592, %v578
        %v594 = vadd.f32 %v593, %v579
        %v595 = vadd.f32 %v594, %v580
        %v596 = vrot.slane %v595, 4
        %v597 = vadd.f32 %v595, %v596
        %v598 = vrot.slane %v597, 2
        %v599 = vadd.f32 %v597, %v598
        %v600 = vrot.slane %v599, 1
        %v601 = vadd.f32 %v599, %v600
        %vm602 = vcmask 1040384
        %v603 = vsel %vm602, %v564, %v601
        %604 = vst [vmem:[%s263] sm:$0x3] %v603
      $region36: #{basic_conv2d.2} parent=27 // pred_fallthru
        _
      %s605 = smul.u32 16, %s20
      %p606 = scmp.lt.s32.totalorder %s605, 63
      %s607 = scalar_select %p606, %s605, 63
      %p608 = scmp.lt.s32.totalorder %s21, 0
      %s609 = scalar_select %p608, %s21, 0
      %s610 = sadd.s32 %s609, %s607
      %s611 = smul.addr %s610, 8
      %s612 = scalar_lea.vmem %s2, %s611
      %p613 = scmp.lt.s32.totalorder %s20, 3
      %s614 = scalar_select %p613, %s20, 3
      %p615 = scmp.lt.s32.totalorder %s21, 0
      %s616 = scalar_select %p615, %s21, 0
      %s617 = sadd.s32 %s616, %s614
      %s618 = smul.addr %s617, 2
      %s619 = scalar_lea.vmem %s3, %s618
      // Predicated region
      $region37: #{basic_conv2d.2} parent=27 // pred_check
        %p620 = pneg %p110
      $region38: #{basic_conv2d.2} parent=27 // pred_check_branch
        %622 = sbr.rel (%p620) target = $region40
      $region39: #{basic_conv2d.2} parent=27 // pred_region
        %s623 = smul.u32 16, %s20
      $region40: #{basic_conv2d.2} parent=27 // pred_fallthru
        _
      // Predicated region
      $region41: #{basic_conv2d.2} parent=27 // pred_check
        %p624 = pneg %p138
      $region42: #{basic_conv2d.2} parent=27 // pred_check_branch
        %626 = sbr.rel (%p624) target = $region44
      $region43: #{basic_conv2d.2} parent=27 // pred_region
        _
      $region44: #{basic_conv2d.2} parent=27 // pred_fallthru
        _
    $region28: #{basic_conv2d.2} parent=5 // pred_fallthru
      _
    %p627 = scmp.le.s32.totalorder 2, %s10
    // Predicated region
    $region45: #{basic_conv2d.2} parent=5 // pred_check
      %p628 = pneg %p627
    $region46: #{basic_conv2d.2} parent=5 // pred_check_branch
      %630 = sbr.rel (%p628) target = $region48
    $region47: #{basic_conv2d.2} parent=5 // pred_region
      %s631 = ssub.s32 %s10, 2
      // Predicated region
      $region49: #{basic_conv2d.2} parent=47 // pred_check
        %p632 = pneg %p116
      $region50: #{basic_conv2d.2} parent=47 // pred_check_branch
        %634 = sbr.rel (%p632) target = $region52
      $region51: #{basic_conv2d.2} parent=47 // pred_region
        %s635 = smul.u32 16, %s23
        %p636 = scmp.lt.s32.totalorder %s635, 63
        %s637 = scalar_select %p636, %s635, 63
        %p638 = scmp.lt.s32.totalorder %s24, 0
        %s639 = scalar_select %p638, %s24, 0
        %s640 = sadd.s32 %s639, %s637
        %s641 = smul.addr %s640, 8
        %s642 = scalar_lea.vmem %s2, %s641
      $region52: #{basic_conv2d.2} parent=47 // pred_fallthru
        _
      // Predicated region
      $region53: #{basic_conv2d.2} parent=47 // pred_check
        %p643 = pneg %p144
      $region54: #{basic_conv2d.2} parent=47 // pred_check_branch
        %645 = sbr.rel (%p643) target = $region56
      $region55: #{basic_conv2d.2} parent=47 // pred_region
        %p646 = scmp.lt.s32.totalorder %s23, 3
        %s647 = scalar_select %p646, %s23, 3
        %p648 = scmp.lt.s32.totalorder %s24, 0
        %s649 = scalar_select %p648, %s24, 0
        %s650 = sadd.s32 %s649, %s647
        %s651 = smul.addr %s650, 2
        %s652 = scalar_lea.vmem %s3, %s651
      $region56: #{basic_conv2d.2} parent=47 // pred_fallthru
        _
    $region48: #{basic_conv2d.2} parent=5 // pred_fallthru
      _
  $region6: #{basic_conv2d.2} parent=0 // loop_footer
    %s14 = sadd.s32 1, %s10
  $region7: #{basic_conv2d.2} parent=0 // loop_footer_branch
    %9 = sbr.rel target = $region3
  $region8: #{basic_conv2d.2} parent=0 // loop_exit
    _

</llo_original>
